<compile_context>
chip_gen: v7x
topology: tpu7x:2x2x1
jax: 0.10.0
libtpu: 0.0.40
codegen_flags: <defaults>
</compile_context>

<pallas_src>
import functools

import jax
import jax.numpy as jnp
import numpy as np
from jax.experimental import pallas as pl
from jax.experimental.pallas import tpu as pltpu

# bf16 MXU inputs / f32 accumulation.  jnp.float32 recovers < 1e-2 accuracy.
_MATMUL_DTYPE = jnp.bfloat16
# Gauss 3-multiply complex product (11 instead of 14 real matmuls per step).
_USE_GAUSS = True
# Single-buffer the constant DFT matrices (their index_map never changes).
_SINGLE_BUFFER_CONSTS = True


def _tpu_generation_params():
    """(lane_target, physical_vmem_bytes, multi_tensorcore) for this chip."""
    kind = ""
    try:
        kind = jax.devices()[0].device_kind.lower()
    except Exception:  # defensive: AOT / unusual backends
        pass
    if "v5 lite" in kind or "v5e" in kind or "v5litepod" in kind:
        return 128, 128 << 20, False          # 128-wide MXU, 1 TC
    if "v7" in kind:
        return 256, 64 << 20, True            # 256-wide MXU, 2 TCs, 64 MiB VMEM
    return 256, 128 << 20, False              # v6e / default: 256-wide, 1 TC


# ---------------------------------------------------------------------------
# In-kernel math helpers
# ---------------------------------------------------------------------------
def _dot(a, b):
    return jnp.dot(a.astype(_MATMUL_DTYPE), b.astype(_MATMUL_DTYPE),
                   preferred_element_type=jnp.float32)


def _gauss_left(c_re, c_im, c_sum, b_re, b_im):
    """(c_re + i c_im) @ (b_re + i b_im); constant operand on the LEFT, its
    re+im sum (c_sum) precomputed on the host."""
    t1 = _dot(c_re, b_re)
    t2 = _dot(c_im, b_im)
    if _USE_GAUSS:
        t3 = _dot(c_sum, b_re + b_im)
        return t1 - t2, t3 - t1 - t2
    return t1 - t2, _dot(c_re, b_im) + _dot(c_im, b_re)


def _gauss_right(a_re, a_im, c_re, c_im, c_sum):
    """(a_re + i a_im) @ (c_re + i c_im); constant operand on the RIGHT."""
    t1 = _dot(a_re, c_re)
    t2 = _dot(a_im, c_im)
    if _USE_GAUSS:
        t3 = _dot(a_re + a_im, c_sum)
        return t1 - t2, t3 - t1 - t2
    return t1 - t2, _dot(a_re, c_im) + _dot(a_im, c_re)


# ---------------------------------------------------------------------------
# Kernel bodies
# ---------------------------------------------------------------------------
def _litho_kernel_lanecat(w_ref, b_ref,
                          krf_re_ref, krf_im_ref, krf_sum_ref,
                          lf_re_ref, lf_im_ref, lf_sum_ref,
                          li_re_ref, li_im_ref, li_sum_ref,
                          kri_re_ref, kri_im_ref, kri_sum_ref,
                          x_ref, out_ref, *, n_ch, seg, w_first):
    """One grid step = bt images x C channels; (H,W) planes lane-concatenated
    channel-major into an (H, C*bt*W) slab.  W-axis transforms are dense
    matmuls against block-diagonal I_P (x) R^T (kept lane-dense at tiny W)."""
    x = x_ref[0].astype(_MATMUL_DTYPE)                        # (H, L)

    # ---- mask -> frequency domain: real-input 2-matmul stage on the wider
    # axis, Gauss 3-matmul stage on the narrower one.
    if w_first:
        a_re = _dot(x, krf_re_ref[...])
        a_im = _dot(x, krf_im_ref[...])
        f_re, f_im = _gauss_left(lf_re_ref[...], lf_im_ref[...],
                                 lf_sum_ref[...], a_re, a_im)
    else:
        a_re = _dot(lf_re_ref[...], x)
        a_im = _dot(lf_im_ref[...], x)
        f_re, f_im = _gauss_right(a_re, a_im, krf_re_ref[...],
                                  krf_im_ref[...], krf_sum_ref[...])

    # ---- down_block / encoder / litho_attn / decoder / up_block ------------
    # TODO(synk): submodule definitions not provided -> identity pass-through.

    # ---- aerial embedding -> spatial domain ---------------------------------
    g_re, g_im = _gauss_left(li_re_ref[...], li_im_ref[...],
                             li_sum_ref[...], f_re, f_im)
    s_re, s_im = _gauss_right(g_re, g_im, kri_re_ref[...],
                              kri_im_ref[...], kri_sum_ref[...])

    # ---- intensity, channel reduction (channel-major lanes -> C-1 full-slab
    # adds), and the 1x1 conv "to_resist" -------------------------------------
    intensity = s_re * s_re + s_im * s_im                     # (H, C*seg)
    acc = intensity[:, :seg]
    for ch in range(1, n_ch):
        acc = acc + intensity[:, ch * seg:(ch + 1) * seg]
    out_ref[0] = w_ref[0] * acc + b_ref[0]


def _litho_kernel_planes(w_ref, b_ref,
                         rf_re_ref, rf_im_ref, rf_sum_ref,
                         lf_re_ref, lf_im_ref, lf_sum_ref,
                         li_re_ref, li_im_ref, li_sum_ref,
                         ri_re_ref, ri_im_ref, ri_sum_ref,
                         x_ref, out_ref, *, n_ch, w_first):
    """One grid step = one image.  W >= 128, so per-plane matmuls are already
    lane-dense and the block-diagonal kron matrices are skipped entirely."""
    acc = None
    for ch in range(n_ch):                                    # static unroll
        xp = x_ref[ch].astype(_MATMUL_DTYPE)                  # (H, W)
        if w_first:
            a_re = _dot(xp, rf_re_ref[...])
            a_im = _dot(xp, rf_im_ref[...])
            f_re, f_im = _gauss_left(lf_re_ref[...], lf_im_ref[...],
                                     lf_sum_ref[...], a_re, a_im)
        else:
            a_re = _dot(lf_re_ref[...], xp)
            a_im = _dot(lf_im_ref[...], xp)
            f_re, f_im = _gauss_right(a_re, a_im, rf_re_ref[...],
                                      rf_im_ref[...], rf_sum_ref[...])
        # TODO(synk): identity middle (see _litho_kernel_lanecat).
        g_re, g_im = _gauss_left(li_re_ref[...], li_im_ref[...],
                                 li_sum_ref[...], f_re, f_im)
        s_re, s_im = _gauss_right(g_re, g_im, ri_re_ref[...],
                                  ri_im_ref[...], ri_sum_ref[...])
        inten = s_re * s_re + s_im * s_im
        acc = inten if acc is None else acc + inten
    out_ref[0] = w_ref[0] * acc + b_ref[0]


# ---------------------------------------------------------------------------
# Host-side helpers
# ---------------------------------------------------------------------------
def _shifted_dft_matrix(n, inverse=False):
    """Matrix of fftshift . (i)fft . ifftshift along one axis (f32 re/im).
    torch applies the shifts over ALL dims, but the batch/channel permutations
    cancel exactly (fft2 never mixes those axes), so per-plane is exact."""
    eye = np.eye(n, dtype=np.complex128)
    m = np.fft.ifftshift(eye, axes=0)
    m = np.fft.ifft(m, axis=0) if inverse else np.fft.fft(m, axis=0)
    m = np.fft.fftshift(m, axes=0)
    return (jnp.asarray(m.real, dtype=jnp.float32),
            jnp.asarray(m.imag, dtype=jnp.float32))


def _to_triple(re, im):
    """(re, im, re+im) cast to the MXU input dtype (Gauss sum hoisted)."""
    return (re.astype(_MATMUL_DTYPE), im.astype(_MATMUL_DTYPE),
            (re + im).astype(_MATMUL_DTYPE))


def _const_spec(rows, cols):
    if _SINGLE_BUFFER_CONSTS:
        return pl.BlockSpec((rows, cols), lambda i: (0, 0),
                            pipeline_mode=pl.Buffered(1))
    return pl.BlockSpec((rows, cols), lambda i: (0, 0))


_SMEM_SPEC = pl.BlockSpec(memory_space=pltpu.MemorySpace.SMEM)


def _pick_bt(n, c, w, lane_target, multi_core):
    """Images per grid step for the lane-concatenated (kron) path."""
    per_img = c * w
    bt = -(-lane_target // per_img)           # fill the MXU lanes
    bt_out = -(-128 // w)                     # lane-dense resist store
    if bt_out > bt and bt_out * per_img <= 2 * lane_target:
        bt = bt_out                           # only if the slab stays modest
    bt = max(1, min(n, bt))
    while n % bt:
        bt -= 1
    if multi_core and n // bt < 2:
        # give the second TensorCore work only if lanes stay >= 128.
        for cand in range(bt - 1, 0, -1):
            if n % cand == 0 and n // cand >= 2 and cand * per_img >= 128:
                return cand
    return bt


def _vmem_limit(vmem_cap, const_bytes, io_bytes, live_bytes):
    est = const_bytes + io_bytes + live_bytes
    return int(min(0.75 * vmem_cap, max(24 << 20, 2 * est)))


# ---------------------------------------------------------------------------
# Forward wrappers
# ---------------------------------------------------------------------------
def _forward_lanecat(mask, params, lane_target, vmem_cap, multi_core):
    n, c, h, w = mask.shape
    bt = _pick_bt(n, c, w, lane_target, multi_core)
    g = n // bt                       # grid steps
    p = bt * c                        # planes lane-concatenated per step
    lanes = p * w                     # input slab lane width
    seg = bt * w                      # output slab lane width (per channel)
    w_first = lanes >= h              # real-input stage on the wider axis

    rf_re, rf_im = params["dft_w"]
    ri_re, ri_im = params["idft_w"]
    eye_p = jnp.eye(p, dtype=jnp.float32)
    krf = _to_triple(jnp.kron(eye_p, rf_re.T), jnp.kron(eye_p, rf_im.T))
    kri = _to_triple(jnp.kron(eye_p, ri_re.T), jnp.kron(eye_p, ri_im.T))
    lf = _to_triple(*params["dft_h"])
    li = _to_triple(*params["idft_h"])

    # channel-MAJOR lane layout (c, b, w): channel reduction = full-slab adds,
    # resist output stays contiguous per image.
    x_cat = (mask.astype(jnp.float32)
             .reshape(g, bt, c, h, w)
             .transpose(0, 3, 2, 1, 4)          # (g, h, c, bt, w)
             .reshape(g, h, lanes)
             .astype(_MATMUL_DTYPE))

    itemsize = np.dtype(_MATMUL_DTYPE).itemsize
    const_bytes = itemsize * (6 * lanes * lanes + 6 * h * h)
    io_bytes = 2 * h * lanes * itemsize + 2 * h * seg * 4
    live_bytes = 14 * h * lanes * 4
    macs = g * ((5 * h * lanes * lanes + 6 * h * h * lanes) if w_first
                else (6 * h * lanes * lanes + 5 * h * h * lanes))
    cost = pl.CostEstimate(
        flops=2 * macs, transcendentals=0,
        bytes_accessed=itemsize * (g * h * lanes + 6 * lanes * lanes
                                   + 6 * h * h) + 4 * g * h * seg + 8)

    kernel = functools.partial(_litho_kernel_lanecat,
                               n_ch=c, seg=seg, w_first=w_first)
    mat_l = _const_spec(lanes, lanes)
    mat_h = _const_spec(h, h)

    out_cat = pl.pallas_call(
        kernel,
        out_shape=jax.ShapeDtypeStruct((g, h, seg), jnp.float32),
        grid=(g,),
        in_specs=[_SMEM_SPEC, _SMEM_SPEC,
                  mat_l, mat_l, mat_l,          # krf triple  (L, L)
                  mat_h, mat_h, mat_h,          # lf  triple  (H, H)
                  mat_h, mat_h, mat_h,          # li  triple  (H, H)
                  mat_l, mat_l, mat_l,          # kri triple  (L, L)
                  pl.BlockSpec((1, h, lanes), lambda i: (i, 0, 0))],
        out_specs=pl.BlockSpec((1, h, seg), lambda i: (i, 0, 0)),
        compiler_params=pltpu.CompilerParams(
            dimension_semantics=("parallel",),
            vmem_limit_bytes=_vmem_limit(vmem_cap, const_bytes, io_bytes,
                                         live_bytes)),
        cost_estimate=cost,
    )(params["resist_w"], params["resist_b"],
      *krf, *lf, *li, *kri, x_cat)

    # (G, H, bt*W) -> (N, 1, H, W)
    return (out_cat.reshape(g, h, bt, w)
            .transpose(0, 2, 1, 3)
            .reshape(n, 1, h, w))


def _forward_planes(mask, params, vmem_cap):
    n, c, h, w = mask.shape
    w_first = w >= h

    rf_re, rf_im = params["dft_w"]
    ri_re, ri_im = params["idft_w"]
    rf = _to_triple(rf_re.T, rf_im.T)
    ri = _to_triple(ri_re.T, ri_im.T)
    lf = _to_triple(*params["dft_h"])
    li = _to_triple(*params["idft_h"])

    x = mask.reshape(n * c, h, w)     # free reshape: no host transpose pass

    itemsize = np.dtype(_MATMUL_DTYPE).itemsize
    const_bytes = itemsize * (6 * w * w + 6 * h * h)
    io_bytes = 2 * c * h * w * 4 + 2 * h * w * 4
    live_bytes = 14 * h * w * 4
    per_plane = (5 * h * w * w + 6 * h * h * w) if w_first \
        else (6 * h * w * w + 5 * h * h * w)
    cost = pl.CostEstimate(
        flops=2 * n * c * per_plane, transcendentals=0,
        bytes_accessed=4 * (n * c * h * w + n * h * w)
                       + itemsize * (6 * w * w + 6 * h * h) + 8)

    kernel = functools.partial(_litho_kernel_planes, n_ch=c, w_first=w_first)
    mat_w = _const_spec(w, w)
    mat_h = _const_spec(h, h)

    out = pl.pallas_call(
        kernel,
        out_shape=jax.ShapeDtypeStruct((n, h, w), jnp.float32),
        grid=(n,),
        in_specs=[_SMEM_SPEC, _SMEM_SPEC,
                  mat_w, mat_w, mat_w,          # Rf^T triple (W, W)
                  mat_h, mat_h, mat_h,          # Lf   triple (H, H)
                  mat_h, mat_h, mat_h,          # Li   triple (H, H)
                  mat_w, mat_w, mat_w,          # Ri^T triple (W, W)
                  pl.BlockSpec((c, h, w), lambda i: (i, 0, 0))],
        out_specs=pl.BlockSpec((1, h, w), lambda i: (i, 0, 0)),
        compiler_params=pltpu.CompilerParams(
            dimension_semantics=("parallel",),
            vmem_limit_bytes=_vmem_limit(vmem_cap, const_bytes, io_bytes,
                                         live_bytes)),
        cost_estimate=cost,
    )(params["resist_w"], params["resist_b"],
      *rf, *lf, *li, *ri, x)

    return out.reshape(n, 1, h, w)


def socs_fused_litho_forward(source, mask, dose, defocus, params):
    """SOCSFusedLitho.forward.  down/up blocks, encoder, litho_attn and
    decoder are identity pass-throughs (definitions not provided), so source,
    dose and defocus are unused."""
    del source, dose, defocus
    _, _, _, w = mask.shape
    lane_target, vmem_cap, multi_core = _tpu_generation_params()
    if w >= 128:
        # W alone fills the MXU lanes: skip the block-diagonal kron entirely.
        return _forward_planes(mask, params, vmem_cap)
    return _forward_lanecat(mask, params, lane_target, vmem_cap, multi_core)


# ---------------------------------------------------------------------------
# Pure-JAX reference (same identity sub-modules) for the correctness check.
# ---------------------------------------------------------------------------
def _reference(mask, w, b):
    z = mask.astype(jnp.complex64)
    z = jnp.fft.fftshift(jnp.fft.fft2(jnp.fft.ifftshift(z, axes=(-2, -1))),
                         axes=(-2, -1))
    z = jnp.fft.fftshift(jnp.fft.ifft2(jnp.fft.ifftshift(z, axes=(-2, -1))),
                         axes=(-2, -1))
    aerial = jnp.sum(jnp.abs(z * jnp.conj(z)), axis=1, keepdims=True)
    return (w * aerial + b).astype(jnp.float32)


def _make_params(h, w, key_w, key_b):
    return {
        "dft_h": _shifted_dft_matrix(h),
        "dft_w": _shifted_dft_matrix(w),
        "idft_h": _shifted_dft_matrix(h, inverse=True),
        "idft_w": _shifted_dft_matrix(w, inverse=True),
        # to_resist = nn.Conv2d(1, 1, 1): scalar weight + scalar bias.
        "resist_w": jax.random.uniform(key_w, (1,), jnp.float32, -1.0, 1.0),
        "resist_b": jax.random.uniform(key_b, (1,), jnp.float32, -1.0, 1.0),
    }


if __name__ == "__main__":
    key = jax.random.PRNGKey(0)
    keys = jax.random.split(key, 4)
    forward = jax.jit(socs_fused_litho_forward)

    # bf16 MXU inputs bound the DFT->IDFT round trip to ~1%; f32 passes 1e-2.
    tol = 1e-2 if _MATMUL_DTYPE == jnp.float32 else 5e-2

    # (N, C, H, W): lane-concatenated kron path (C=1 and C>1 channel
    # reduction) and the per-plane no-kron path (W >= 128).
    configs = [(2, 1, 16, 16), (2, 3, 16, 16), (2, 2, 16, 128)]
    for idx, (n, c, h, w) in enumerate(configs):
        kd = jax.random.split(keys[idx], 6)
        mask = jax.random.uniform(kd[0], (n, c, h, w), dtype=jnp.float32)
        source = jax.random.uniform(kd[1], (n, 8, 8), dtype=jnp.float32)
        dose = jax.random.uniform(kd[2], (n,), dtype=jnp.float32)
        defocus = jax.random.uniform(kd[3], (n,), dtype=jnp.float32)
        params = _make_params(h, w, kd[4], kd[5])

        out = jax.block_until_ready(
            forward(source, mask, dose, defocus, params))
        assert out.shape == (n, 1, h, w)

        ref = _reference(mask, params["resist_w"][0], params["resist_b"][0])
        np.testing.assert_allclose(np.asarray(out), np.asarray(ref),
                                   rtol=tol, atol=tol)

    print("KERNEL_OK")
</pallas_src>

<mosaic_0001>
module attributes {stable_mosaic.version = 11 : i64} {
  func.func @_litho_kernel_lanecat(%arg0: i32, %arg1: memref<1xf32, #tpu.memory_space<smem>>, %arg2: memref<1xf32, #tpu.memory_space<smem>>, %arg3: memref<32x32xbf16, #tpu.memory_space<vmem>>, %arg4: memref<32x32xbf16, #tpu.memory_space<vmem>>, %arg5: memref<32x32xbf16, #tpu.memory_space<vmem>>, %arg6: memref<16x16xbf16, #tpu.memory_space<vmem>>, %arg7: memref<16x16xbf16, #tpu.memory_space<vmem>>, %arg8: memref<16x16xbf16, #tpu.memory_space<vmem>>, %arg9: memref<16x16xbf16, #tpu.memory_space<vmem>>, %arg10: memref<16x16xbf16, #tpu.memory_space<vmem>>, %arg11: memref<16x16xbf16, #tpu.memory_space<vmem>>, %arg12: memref<32x32xbf16, #tpu.memory_space<vmem>>, %arg13: memref<32x32xbf16, #tpu.memory_space<vmem>>, %arg14: memref<32x32xbf16, #tpu.memory_space<vmem>>, %arg15: memref<1x16x32xbf16, #tpu.memory_space<vmem>>, %arg16: memref<1x16x32xf32, #tpu.memory_space<vmem>>) attributes {dimension_semantics = [#tpu.dimension_semantics<parallel>], iteration_bounds = array<i64: 1>, scalar_prefetch = 0 : i64, scratch_operands = 0 : i64, tpu.core_type = #tpu.core_type<tc>, window_params = [{transform_indices = @transform_0, window_bounds = array<i64: 1>}, {transform_indices = @transform_1, window_bounds = array<i64: 1>}, {pipeline_mode = #tpu.pipeline_mode<synchronous>, transform_indices = @transform_2, window_bounds = array<i64: 32, 32>}, {pipeline_mode = #tpu.pipeline_mode<synchronous>, transform_indices = @transform_3, window_bounds = array<i64: 32, 32>}, {pipeline_mode = #tpu.pipeline_mode<synchronous>, transform_indices = @transform_4, window_bounds = array<i64: 32, 32>}, {pipeline_mode = #tpu.pipeline_mode<synchronous>, transform_indices = @transform_5, window_bounds = array<i64: 16, 16>}, {pipeline_mode = #tpu.pipeline_mode<synchronous>, transform_indices = @transform_6, window_bounds = array<i64: 16, 16>}, {pipeline_mode = #tpu.pipeline_mode<synchronous>, transform_indices = @transform_7, window_bounds = array<i64: 16, 16>}, {pipeline_mode = #tpu.pipeline_mode<synchronous>, transform_indices = @transform_8, window_bounds = array<i64: 16, 16>}, {pipeline_mode = #tpu.pipeline_mode<synchronous>, transform_indices = @transform_9, window_bounds = array<i64: 16, 16>}, {pipeline_mode = #tpu.pipeline_mode<synchronous>, transform_indices = @transform_10, window_bounds = array<i64: 16, 16>}, {pipeline_mode = #tpu.pipeline_mode<synchronous>, transform_indices = @transform_11, window_bounds = array<i64: 32, 32>}, {pipeline_mode = #tpu.pipeline_mode<synchronous>, transform_indices = @transform_12, window_bounds = array<i64: 32, 32>}, {pipeline_mode = #tpu.pipeline_mode<synchronous>, transform_indices = @transform_13, window_bounds = array<i64: 32, 32>}, {transform_indices = @transform_14, window_bounds = array<i64: 1, 16, 32>}, {transform_indices = @transform_15, window_bounds = array<i64: 1, 16, 32>}]} {
    %c0 = arith.constant 0 : index
    %c0_0 = arith.constant 0 : index
    %c0_1 = arith.constant 0 : index
    %0 = vector.load %arg15[%c0, %c0_0, %c0_1] : memref<1x16x32xbf16, #tpu.memory_space<vmem>>, vector<1x16x32xbf16>
    %1 = vector.shape_cast %0 : vector<1x16x32xbf16> to vector<16x32xbf16>
    %c0_2 = arith.constant 0 : index
    %c0_3 = arith.constant 0 : index
    %2 = vector.load %arg3[%c0_2, %c0_3] : memref<32x32xbf16, #tpu.memory_space<vmem>>, vector<32x32xbf16>
    %cst = arith.constant dense<0.000000e+00> : vector<16x32xf32>
    %3 = tpu.matmul %1, %2, %cst {dimension_numbers = #tpu.dot_dimension_numbers<[1], [0], [0], [1], [0, 0, 1, 1], [], []>} : vector<16x32xbf16>, vector<32x32xbf16>, vector<16x32xf32> -> vector<16x32xf32>
    %c0_4 = arith.constant 0 : index
    %c0_5 = arith.constant 0 : index
    %4 = vector.load %arg4[%c0_4, %c0_5] : memref<32x32xbf16, #tpu.memory_space<vmem>>, vector<32x32xbf16>
    %cst_6 = arith.constant dense<0.000000e+00> : vector<16x32xf32>
    %5 = tpu.matmul %1, %4, %cst_6 {dimension_numbers = #tpu.dot_dimension_numbers<[1], [0], [0], [1], [0, 0, 1, 1], [], []>} : vector<16x32xbf16>, vector<32x32xbf16>, vector<16x32xf32> -> vector<16x32xf32>
    %c0_7 = arith.constant 0 : index
    %c0_8 = arith.constant 0 : index
    %6 = vector.load %arg6[%c0_7, %c0_8] : memref<16x16xbf16, #tpu.memory_space<vmem>>, vector<16x16xbf16>
    %c0_9 = arith.constant 0 : index
    %c0_10 = arith.constant 0 : index
    %7 = vector.load %arg7[%c0_9, %c0_10] : memref<16x16xbf16, #tpu.memory_space<vmem>>, vector<16x16xbf16>
    %c0_11 = arith.constant 0 : index
    %c0_12 = arith.constant 0 : index
    %8 = vector.load %arg8[%c0_11, %c0_12] : memref<16x16xbf16, #tpu.memory_space<vmem>>, vector<16x16xbf16>
    %9 = arith.truncf %3 : vector<16x32xf32> to vector<16x32xbf16>
    %cst_13 = arith.constant dense<0.000000e+00> : vector<16x32xf32>
    %10 = tpu.matmul %6, %9, %cst_13 {dimension_numbers = #tpu.dot_dimension_numbers<[1], [0], [0], [1], [0, 0, 1, 1], [], []>} : vector<16x16xbf16>, vector<16x32xbf16>, vector<16x32xf32> -> vector<16x32xf32>
    %11 = arith.truncf %5 : vector<16x32xf32> to vector<16x32xbf16>
    %cst_14 = arith.constant dense<0.000000e+00> : vector<16x32xf32>
    %12 = tpu.matmul %7, %11, %cst_14 {dimension_numbers = #tpu.dot_dimension_numbers<[1], [0], [0], [1], [0, 0, 1, 1], [], []>} : vector<16x16xbf16>, vector<16x32xbf16>, vector<16x32xf32> -> vector<16x32xf32>
    %13 = arith.addf %3, %5 : vector<16x32xf32>
    %14 = arith.truncf %13 : vector<16x32xf32> to vector<16x32xbf16>
    %cst_15 = arith.constant dense<0.000000e+00> : vector<16x32xf32>
    %15 = tpu.matmul %8, %14, %cst_15 {dimension_numbers = #tpu.dot_dimension_numbers<[1], [0], [0], [1], [0, 0, 1, 1], [], []>} : vector<16x16xbf16>, vector<16x32xbf16>, vector<16x32xf32> -> vector<16x32xf32>
    %16 = arith.subf %10, %12 : vector<16x32xf32>
    %17 = arith.subf %15, %10 : vector<16x32xf32>
    %18 = arith.subf %17, %12 : vector<16x32xf32>
    %c0_16 = arith.constant 0 : index
    %c0_17 = arith.constant 0 : index
    %19 = vector.load %arg9[%c0_16, %c0_17] : memref<16x16xbf16, #tpu.memory_space<vmem>>, vector<16x16xbf16>
    %c0_18 = arith.constant 0 : index
    %c0_19 = arith.constant 0 : index
    %20 = vector.load %arg10[%c0_18, %c0_19] : memref<16x16xbf16, #tpu.memory_space<vmem>>, vector<16x16xbf16>
    %c0_20 = arith.constant 0 : index
    %c0_21 = arith.constant 0 : index
    %21 = vector.load %arg11[%c0_20, %c0_21] : memref<16x16xbf16, #tpu.memory_space<vmem>>, vector<16x16xbf16>
    %22 = arith.truncf %16 : vector<16x32xf32> to vector<16x32xbf16>
    %cst_22 = arith.constant dense<0.000000e+00> : vector<16x32xf32>
    %23 = tpu.matmul %19, %22, %cst_22 {dimension_numbers = #tpu.dot_dimension_numbers<[1], [0], [0], [1], [0, 0, 1, 1], [], []>} : vector<16x16xbf16>, vector<16x32xbf16>, vector<16x32xf32> -> vector<16x32xf32>
    %24 = arith.truncf %18 : vector<16x32xf32> to vector<16x32xbf16>
    %cst_23 = arith.constant dense<0.000000e+00> : vector<16x32xf32>
    %25 = tpu.matmul %20, %24, %cst_23 {dimension_numbers = #tpu.dot_dimension_numbers<[1], [0], [0], [1], [0, 0, 1, 1], [], []>} : vector<16x16xbf16>, vector<16x32xbf16>, vector<16x32xf32> -> vector<16x32xf32>
    %26 = arith.addf %16, %18 : vector<16x32xf32>
    %27 = arith.truncf %26 : vector<16x32xf32> to vector<16x32xbf16>
    %cst_24 = arith.constant dense<0.000000e+00> : vector<16x32xf32>
    %28 = tpu.matmul %21, %27, %cst_24 {dimension_numbers = #tpu.dot_dimension_numbers<[1], [0], [0], [1], [0, 0, 1, 1], [], []>} : vector<16x16xbf16>, vector<16x32xbf16>, vector<16x32xf32> -> vector<16x32xf32>
    %29 = arith.subf %23, %25 : vector<16x32xf32>
    %30 = arith.subf %28, %23 : vector<16x32xf32>
    %31 = arith.subf %30, %25 : vector<16x32xf32>
    %c0_25 = arith.constant 0 : index
    %c0_26 = arith.constant 0 : index
    %32 = vector.load %arg12[%c0_25, %c0_26] : memref<32x32xbf16, #tpu.memory_space<vmem>>, vector<32x32xbf16>
    %c0_27 = arith.constant 0 : index
    %c0_28 = arith.constant 0 : index
    %33 = vector.load %arg13[%c0_27, %c0_28] : memref<32x32xbf16, #tpu.memory_space<vmem>>, vector<32x32xbf16>
    %c0_29 = arith.constant 0 : index
    %c0_30 = arith.constant 0 : index
    %34 = vector.load %arg14[%c0_29, %c0_30] : memref<32x32xbf16, #tpu.memory_space<vmem>>, vector<32x32xbf16>
    %35 = arith.truncf %29 : vector<16x32xf32> to vector<16x32xbf16>
    %cst_31 = arith.constant dense<0.000000e+00> : vector<16x32xf32>
    %36 = tpu.matmul %35, %32, %cst_31 {dimension_numbers = #tpu.dot_dimension_numbers<[1], [0], [0], [1], [0, 0, 1, 1], [], []>} : vector<16x32xbf16>, vector<32x32xbf16>, vector<16x32xf32> -> vector<16x32xf32>
    %37 = arith.truncf %31 : vector<16x32xf32> to vector<16x32xbf16>
    %cst_32 = arith.constant dense<0.000000e+00> : vector<16x32xf32>
    %38 = tpu.matmul %37, %33, %cst_32 {dimension_numbers = #tpu.dot_dimension_numbers<[1], [0], [0], [1], [0, 0, 1, 1], [], []>} : vector<16x32xbf16>, vector<32x32xbf16>, vector<16x32xf32> -> vector<16x32xf32>
    %39 = arith.addf %29, %31 : vector<16x32xf32>
    %40 = arith.truncf %39 : vector<16x32xf32> to vector<16x32xbf16>
    %cst_33 = arith.constant dense<0.000000e+00> : vector<16x32xf32>
    %41 = tpu.matmul %40, %34, %cst_33 {dimension_numbers = #tpu.dot_dimension_numbers<[1], [0], [0], [1], [0, 0, 1, 1], [], []>} : vector<16x32xbf16>, vector<32x32xbf16>, vector<16x32xf32> -> vector<16x32xf32>
    %42 = arith.subf %36, %38 : vector<16x32xf32>
    %43 = arith.subf %41, %36 : vector<16x32xf32>
    %44 = arith.subf %43, %38 : vector<16x32xf32>
    %45 = arith.mulf %42, %42 : vector<16x32xf32>
    %46 = arith.mulf %44, %44 : vector<16x32xf32>
    %47 = arith.addf %45, %46 : vector<16x32xf32>
    %c0_34 = arith.constant 0 : index
    %48 = memref.load %arg1[%c0_34] : memref<1xf32, #tpu.memory_space<smem>>
    %49 = vector.broadcast %48 : f32 to vector<16x32xf32>
    %50 = arith.mulf %49, %47 : vector<16x32xf32>
    %c0_35 = arith.constant 0 : index
    %51 = memref.load %arg2[%c0_35] : memref<1xf32, #tpu.memory_space<smem>>
    %52 = vector.broadcast %51 : f32 to vector<16x32xf32>
    %53 = arith.addf %50, %52 : vector<16x32xf32>
    %c0_36 = arith.constant 0 : index
    %c0_37 = arith.constant 0 : index
    %c0_38 = arith.constant 0 : index
    %54 = vector.load %arg16[%c0_36, %c0_37, %c0_38] : memref<1x16x32xf32, #tpu.memory_space<vmem>>, vector<1x16x32xf32>
    %55 = vector.shape_cast %54 : vector<1x16x32xf32> to vector<16x32xf32>
    %56 = vector.shape_cast %53 : vector<16x32xf32> to vector<1x16x32xf32>
    tpu.vector_store %arg16[%c0_36, %c0_37, %c0_38], %56 {strides = array<i32>} : memref<1x16x32xf32, #tpu.memory_space<vmem>>, vector<1x16x32xf32>,
    return
  }
  func.func @transform_0(%arg0: i32) -> i32 {
    %c0_i32 = arith.constant 0 : i32
    %c0_i32_0 = arith.constant 0 : i32
    return %c0_i32 : i32
  }
  func.func @transform_1(%arg0: i32) -> i32 {
    %c0_i32 = arith.constant 0 : i32
    %c0_i32_0 = arith.constant 0 : i32
    return %c0_i32 : i32
  }
  func.func @transform_2(%arg0: i32) -> (i32, i32) {
    %c0_i32 = arith.constant 0 : i32
    %c0_i32_0 = arith.constant 0 : i32
    %c0_i32_1 = arith.constant 0 : i32
    return %c0_i32, %c0_i32_0 : i32, i32
  }
  func.func @transform_3(%arg0: i32) -> (i32, i32) {
    %c0_i32 = arith.constant 0 : i32
    %c0_i32_0 = arith.constant 0 : i32
    %c0_i32_1 = arith.constant 0 : i32
    return %c0_i32, %c0_i32_0 : i32, i32
  }
  func.func @transform_4(%arg0: i32) -> (i32, i32) {
    %c0_i32 = arith.constant 0 : i32
    %c0_i32_0 = arith.constant 0 : i32
    %c0_i32_1 = arith.constant 0 : i32
    return %c0_i32, %c0_i32_0 : i32, i32
  }
  func.func @transform_5(%arg0: i32) -> (i32, i32) {
    %c0_i32 = arith.constant 0 : i32
    %c0_i32_0 = arith.constant 0 : i32
    %c0_i32_1 = arith.constant 0 : i32
    return %c0_i32, %c0_i32_0 : i32, i32
  }
  func.func @transform_6(%arg0: i32) -> (i32, i32) {
    %c0_i32 = arith.constant 0 : i32
    %c0_i32_0 = arith.constant 0 : i32
    %c0_i32_1 = arith.constant 0 : i32
    return %c0_i32, %c0_i32_0 : i32, i32
  }
  func.func @transform_7(%arg0: i32) -> (i32, i32) {
    %c0_i32 = arith.constant 0 : i32
    %c0_i32_0 = arith.constant 0 : i32
    %c0_i32_1 = arith.constant 0 : i32
    return %c0_i32, %c0_i32_0 : i32, i32
  }
  func.func @transform_8(%arg0: i32) -> (i32, i32) {
    %c0_i32 = arith.constant 0 : i32
    %c0_i32_0 = arith.constant 0 : i32
    %c0_i32_1 = arith.constant 0 : i32
    return %c0_i32, %c0_i32_0 : i32, i32
  }
  func.func @transform_9(%arg0: i32) -> (i32, i32) {
    %c0_i32 = arith.constant 0 : i32
    %c0_i32_0 = arith.constant 0 : i32
    %c0_i32_1 = arith.constant 0 : i32
    return %c0_i32, %c0_i32_0 : i32, i32
  }
  func.func @transform_10(%arg0: i32) -> (i32, i32) {
    %c0_i32 = arith.constant 0 : i32
    %c0_i32_0 = arith.constant 0 : i32
    %c0_i32_1 = arith.constant 0 : i32
    return %c0_i32, %c0_i32_0 : i32, i32
  }
  func.func @transform_11(%arg0: i32) -> (i32, i32) {
    %c0_i32 = arith.constant 0 : i32
    %c0_i32_0 = arith.constant 0 : i32
    %c0_i32_1 = arith.constant 0 : i32
    return %c0_i32, %c0_i32_0 : i32, i32
  }
  func.func @transform_12(%arg0: i32) -> (i32, i32) {
    %c0_i32 = arith.constant 0 : i32
    %c0_i32_0 = arith.constant 0 : i32
    %c0_i32_1 = arith.constant 0 : i32
    return %c0_i32, %c0_i32_0 : i32, i32
  }
  func.func @transform_13(%arg0: i32) -> (i32, i32) {
    %c0_i32 = arith.constant 0 : i32
    %c0_i32_0 = arith.constant 0 : i32
    %c0_i32_1 = arith.constant 0 : i32
    return %c0_i32, %c0_i32_0 : i32, i32
  }
  func.func @transform_14(%arg0: i32) -> (i32, i32, i32) {
    %c0_i32 = arith.constant 0 : i32
    %c0_i32_0 = arith.constant 0 : i32
    %c0_i32_1 = arith.constant 0 : i32
    return %arg0, %c0_i32, %c0_i32_0 : i32, i32, i32
  }
  func.func @transform_15(%arg0: i32) -> (i32, i32, i32) {
    %c0_i32 = arith.constant 0 : i32
    %c0_i32_0 = arith.constant 0 : i32
    %c0_i32_1 = arith.constant 0 : i32
    return %arg0, %c0_i32, %c0_i32_0 : i32, i32, i32
  }
}

</mosaic_0001>

<llo_original>
// kernel: socs_fused_litho_forward.1
$region0: #{socs_fused_litho_forward.1}
  #allocation0 [shape = 'u32[]', space=smem, size = 0x4, offset = 0x4, fixed_abs, tag = 'smem constant byte address 0x4 - core index']
  #allocation1 [shape = 'u32[144,128]{1,0:T(1,128)}', space=vmem, size = 0x12000, scoped, tag = 'internal scratch']
  #allocation2 [shape = 'f32[1]{0:T(128)S(6)}', space=smem, size = 0x200, scoped, tag = 'scoped memory for socs_fused_litho_forward.1']
  #allocation3 [shape = 'f32[1]{0:T(128)S(6)}', space=smem, size = 0x200, scoped, tag = 'scoped memory for socs_fused_litho_forward.1']
  %s0 = inlined_call_operand.<no memory space> [shape: f32[1], index: 0, kind: input, shape index: {}]
  %s1 = inlined_call_operand.<no memory space> [shape: f32[1], index: 1, kind: input, shape index: {}]
  %s2 = inlined_call_operand.vmem [shape: bf16[32,32], index: 2, kind: input, shape index: {}]
  %s3 = inlined_call_operand.vmem [shape: bf16[32,32], index: 3, kind: input, shape index: {}]
  %s4 = inlined_call_operand.vmem [shape: bf16[32,32], index: 4, kind: input, shape index: {}]
  %s5 = inlined_call_operand.vmem [shape: bf16[16,16], index: 5, kind: input, shape index: {}]
  %s6 = inlined_call_operand.vmem [shape: bf16[16,16], index: 6, kind: input, shape index: {}]
  %s7 = inlined_call_operand.vmem [shape: bf16[16,16], index: 7, kind: input, shape index: {}]
  %s8 = inlined_call_operand.vmem [shape: bf16[16,16], index: 8, kind: input, shape index: {}]
  %s9 = inlined_call_operand.vmem [shape: bf16[16,16], index: 9, kind: input, shape index: {}]
  %s10 = inlined_call_operand.vmem [shape: bf16[16,16], index: 10, kind: input, shape index: {}]
  %s11 = inlined_call_operand.vmem [shape: bf16[32,32], index: 11, kind: input, shape index: {}]
  %s12 = inlined_call_operand.vmem [shape: bf16[32,32], index: 12, kind: input, shape index: {}]
  %s13 = inlined_call_operand.vmem [shape: bf16[32,32], index: 13, kind: input, shape index: {}]
  %s14 = inlined_call_operand.vmem [shape: bf16[1,16,32], index: 14, kind: input, shape index: {}]
  %s15 = inlined_call_operand.vmem [shape: f32[1,16,32], index: 15, kind: output, shape index: {}]
  %s16 = sld [smem:[#allocation0]]
  $region70: #{socs_fused_litho_forward.1} parent=0
    _
  %s18 = ssub.s32 1, %s16
  %s19 = scalar_select 0, %s18, %s16
  %20 = sst [smem:[#allocation2]] %s0
  %21 = sst [smem:[#allocation3]] %s1
  // Predicated region
  $region2: #{socs_fused_litho_forward.1} parent=0 // pred_check
    _
  $region3: #{socs_fused_litho_forward.1} parent=0 // pred_check_branch
    %23 = sbr.rel (0) target = $region5
  $region4: #{socs_fused_litho_forward.1} parent=0 // pred_region
    _
  $region5: #{socs_fused_litho_forward.1} parent=0 // pred_fallthru
    _
  // Predicated region
  $region6: #{socs_fused_litho_forward.1} parent=0 // pred_check
    _
  $region7: #{socs_fused_litho_forward.1} parent=0 // pred_check_branch
    %25 = sbr.rel (0) target = $region9
  $region8: #{socs_fused_litho_forward.1} parent=0 // pred_region
    _
  $region9: #{socs_fused_litho_forward.1} parent=0 // pred_fallthru
    _
  // Predicated region
  $region10: #{socs_fused_litho_forward.1} parent=0 // pred_check
    _
  $region11: #{socs_fused_litho_forward.1} parent=0 // pred_check_branch
    %27 = sbr.rel (0) target = $region13
  $region12: #{socs_fused_litho_forward.1} parent=0 // pred_region
    _
  $region13: #{socs_fused_litho_forward.1} parent=0 // pred_fallthru
    _
  // Predicated region
  $region14: #{socs_fused_litho_forward.1} parent=0 // pred_check
    _
  $region15: #{socs_fused_litho_forward.1} parent=0 // pred_check_branch
    %29 = sbr.rel (0) target = $region17
  $region16: #{socs_fused_litho_forward.1} parent=0 // pred_region
    _
  $region17: #{socs_fused_litho_forward.1} parent=0 // pred_fallthru
    _
  // Predicated region
  $region18: #{socs_fused_litho_forward.1} parent=0 // pred_check
    _
  $region19: #{socs_fused_litho_forward.1} parent=0 // pred_check_branch
    %31 = sbr.rel (0) target = $region21
  $region20: #{socs_fused_litho_forward.1} parent=0 // pred_region
    _
  $region21: #{socs_fused_litho_forward.1} parent=0 // pred_fallthru
    _
  // Predicated region
  $region22: #{socs_fused_litho_forward.1} parent=0 // pred_check
    _
  $region23: #{socs_fused_litho_forward.1} parent=0 // pred_check_branch
    %33 = sbr.rel (0) target = $region25
  $region24: #{socs_fused_litho_forward.1} parent=0 // pred_region
    _
  $region25: #{socs_fused_litho_forward.1} parent=0 // pred_fallthru
    _
  // Predicated region
  $region26: #{socs_fused_litho_forward.1} parent=0 // pred_check
    _
  $region27: #{socs_fused_litho_forward.1} parent=0 // pred_check_branch
    %35 = sbr.rel (0) target = $region29
  $region28: #{socs_fused_litho_forward.1} parent=0 // pred_region
    _
  $region29: #{socs_fused_litho_forward.1} parent=0 // pred_fallthru
    _
  // Predicated region
  $region30: #{socs_fused_litho_forward.1} parent=0 // pred_check
    _
  $region31: #{socs_fused_litho_forward.1} parent=0 // pred_check_branch
    %37 = sbr.rel (0) target = $region33
  $region32: #{socs_fused_litho_forward.1} parent=0 // pred_region
    _
  $region33: #{socs_fused_litho_forward.1} parent=0 // pred_fallthru
    _
  // Predicated region
  $region34: #{socs_fused_litho_forward.1} parent=0 // pred_check
    _
  $region35: #{socs_fused_litho_forward.1} parent=0 // pred_check_branch
    %39 = sbr.rel (0) target = $region37
  $region36: #{socs_fused_litho_forward.1} parent=0 // pred_region
    _
  $region37: #{socs_fused_litho_forward.1} parent=0 // pred_fallthru
    _
  // Predicated region
  $region38: #{socs_fused_litho_forward.1} parent=0 // pred_check
    _
  $region39: #{socs_fused_litho_forward.1} parent=0 // pred_check_branch
    %41 = sbr.rel (0) target = $region41
  $region40: #{socs_fused_litho_forward.1} parent=0 // pred_region
    _
  $region41: #{socs_fused_litho_forward.1} parent=0 // pred_fallthru
    _
  // Predicated region
  $region42: #{socs_fused_litho_forward.1} parent=0 // pred_check
    _
  $region43: #{socs_fused_litho_forward.1} parent=0 // pred_check_branch
    %43 = sbr.rel (0) target = $region45
  $region44: #{socs_fused_litho_forward.1} parent=0 // pred_region
    _
  $region45: #{socs_fused_litho_forward.1} parent=0 // pred_fallthru
    _
  // Predicated region
  $region46: #{socs_fused_litho_forward.1} parent=0 // pred_check
    _
  $region47: #{socs_fused_litho_forward.1} parent=0 // pred_check_branch
    %45 = sbr.rel (0) target = $region49
  $region48: #{socs_fused_litho_forward.1} parent=0 // pred_region
    _
  $region49: #{socs_fused_litho_forward.1} parent=0 // pred_fallthru
    _
  // Predicated region
  $region50: #{socs_fused_litho_forward.1} parent=0 // pred_check
    _
  $region51: #{socs_fused_litho_forward.1} parent=0 // pred_check_branch
    %47 = sbr.rel (0) target = $region53
  $region52: #{socs_fused_litho_forward.1} parent=0 // pred_region
    _
  $region53: #{socs_fused_litho_forward.1} parent=0 // pred_fallthru
    _
  // Predicated region
  $region54: #{socs_fused_litho_forward.1} parent=0 // pred_check
    _
  $region55: #{socs_fused_litho_forward.1} parent=0 // pred_check_branch
    %49 = sbr.rel (0) target = $region57
  $region56: #{socs_fused_litho_forward.1} parent=0 // pred_region
    _
  $region57: #{socs_fused_litho_forward.1} parent=0 // pred_fallthru
    _
  // Predicated region
  $region58: #{socs_fused_litho_forward.1} parent=0 // pred_check
    _
  $region59: #{socs_fused_litho_forward.1} parent=0 // pred_check_branch
    %51 = sbr.rel (0) target = $region61
  $region60: #{socs_fused_litho_forward.1} parent=0 // pred_region
    _
  $region61: #{socs_fused_litho_forward.1} parent=0 // pred_fallthru
    _
  %v53 = vld [vmem:[%s14] sm:$0xf]
  %v54 = vld [vmem:[%s14 + $0x4] sm:$0xf]
  %v55 = vld [vmem:[%s2] sm:$0xf]
  %v56 = vld [vmem:[%s2 + $0x4] sm:$0xf]
  %v57 = vld [vmem:[%s2 + $0x8] sm:$0xf]
  %v58 = vld [vmem:[%s2 + $0xc] sm:$0xf]
  %v61 = vunpack.c.l.b16 %v53
  %v62 = vunpack.c.l.b16 %v54
  %v63 = vpack.c.b16 %v62, %v61
  %v68 = vunpack.c.l.b16 %v55
  %v69 = vunpack.c.l.b16 %v56
  %v70 = vunpack.c.l.b16 %v57
  %v71 = vunpack.c.l.b16 %v58
  %v72 = vpack.c.b16 %v69, %v68
  %v73 = vpack.c.b16 %v71, %v70
  %vm76 = vcmask 261120
  %v78 = vsel %vm76, %v63, 0
  %80 = vmatprep.subr.bf16.mxu0 0
  %81 = vmatpush1.bf16.msra.mxu0 %v72
  %82 = vmatprep.subr.bf16.mxu0 0
  %83 = vmatpush1.bf16.msra.mxu0 %v73
  %84 = vmatprep.subr.bf16.mxu0 0
  %85 = vmatpush1.bf16.msra.mxu0 0
  %86 = vmatprep.subr.bf16.mxu0 0
  %87 = vmatpush1.bf16.msra.mxu0 0
  %88 = vmatprep.subr.bf16.mxu0 0
  %89 = vmatpush1.bf16.msra.mxu0 0
  %90 = vmatprep.subr.bf16.mxu0 0
  %91 = vmatpush1.bf16.msra.mxu0 0
  %92 = vmatprep.subr.bf16.mxu0 0
  %93 = vmatpush1.bf16.msra.mxu0 0
  %94 = vmatprep.subr.bf16.mxu0 0
  %95 = vmatpush1.bf16.msra.mxu0 0
  %96 = vmatprep.subr.bf16.mxu0 0
  %97 = vmatpush1.bf16.msra.mxu0 0
  %98 = vmatprep.subr.bf16.mxu0 0
  %99 = vmatpush1.bf16.msra.mxu0 0
  %100 = vmatprep.subr.bf16.mxu0 0
  %101 = vmatpush1.bf16.msra.mxu0 0
  %102 = vmatprep.subr.bf16.mxu0 0
  %103 = vmatpush1.bf16.msra.mxu0 0
  %104 = vmatprep.subr.bf16.mxu0 0
  %105 = vmatpush1.bf16.msra.mxu0 0
  %106 = vmatprep.subr.bf16.mxu0 0
  %107 = vmatpush1.bf16.msra.mxu0 0
  %108 = vmatprep.subr.bf16.mxu0 0
  %109 = vmatpush1.bf16.msra.mxu0 0
  %110 = vmatprep.subr.bf16.mxu0 0
  %111 = vmatpush1.bf16.msra.mxu0 0
  %112 = vmatprep.mubr.bf16.mxu0 0
  %113 = vmatmul.mubr.bf16.gmra.mrb[0].mxu0 %v78
  %v114 = vpop.f32.mrb[0].mxu0
  %v115 = vadd.f32 0.0, %v114
  %v116 = vpop.f32.mrb[0].mxu0
  %v117 = vpop.f32.mrb[0].mxu0
  %v118 = vadd.f32 0.0, %v117
  %v119 = vpop.f32.mrb[0].mxu0
  %120 = vdwg.mxu0
  %v121 = vld [vmem:[%s3] sm:$0xf]
  %v122 = vld [vmem:[%s3 + $0x4] sm:$0xf]
  %v123 = vld [vmem:[%s3 + $0x8] sm:$0xf]
  %v124 = vld [vmem:[%s3 + $0xc] sm:$0xf]
  %v129 = vunpack.c.l.b16 %v121
  %v130 = vunpack.c.l.b16 %v122
  %v131 = vunpack.c.l.b16 %v123
  %v132 = vunpack.c.l.b16 %v124
  %v133 = vpack.c.b16 %v130, %v129
  %v134 = vpack.c.b16 %v132, %v131
  %137 = vmatprep.subr.bf16.mxu0 0
  %138 = vmatpush1.bf16.msra.mxu0 %v133
  %139 = vmatprep.subr.bf16.mxu0 0
  %140 = vmatpush1.bf16.msra.mxu0 %v134
  %141 = vmatprep.subr.bf16.mxu0 0
  %142 = vmatpush1.bf16.msra.mxu0 0
  %143 = vmatprep.subr.bf16.mxu0 0
  %144 = vmatpush1.bf16.msra.mxu0 0
  %145 = vmatprep.subr.bf16.mxu0 0
  %146 = vmatpush1.bf16.msra.mxu0 0
  %147 = vmatprep.subr.bf16.mxu0 0
  %148 = vmatpush1.bf16.msra.mxu0 0
  %149 = vmatprep.subr.bf16.mxu0 0
  %150 = vmatpush1.bf16.msra.mxu0 0
  %151 = vmatprep.subr.bf16.mxu0 0
  %152 = vmatpush1.bf16.msra.mxu0 0
  %153 = vmatprep.subr.bf16.mxu0 0
  %154 = vmatpush1.bf16.msra.mxu0 0
  %155 = vmatprep.subr.bf16.mxu0 0
  %156 = vmatpush1.bf16.msra.mxu0 0
  %157 = vmatprep.subr.bf16.mxu0 0
  %158 = vmatpush1.bf16.msra.mxu0 0
  %159 = vmatprep.subr.bf16.mxu0 0
  %160 = vmatpush1.bf16.msra.mxu0 0
  %161 = vmatprep.subr.bf16.mxu0 0
  %162 = vmatpush1.bf16.msra.mxu0 0
  %163 = vmatprep.subr.bf16.mxu0 0
  %164 = vmatpush1.bf16.msra.mxu0 0
  %165 = vmatprep.subr.bf16.mxu0 0
  %166 = vmatpush1.bf16.msra.mxu0 0
  %167 = vmatprep.subr.bf16.mxu0 0
  %168 = vmatpush1.bf16.msra.mxu0 0
  %169 = vmatprep.mubr.bf16.mxu0 0
  %170 = vmatmul.mubr.bf16.gmra.mrb[0].mxu0 %v78
  %v171 = vpop.f32.mrb[0].mxu0
  %v172 = vadd.f32 0.0, %v171
  %v173 = vpop.f32.mrb[0].mxu0
  %v174 = vpop.f32.mrb[0].mxu0
  %v175 = vadd.f32 0.0, %v174
  %v176 = vpop.f32.mrb[0].mxu0
  %177 = vdwg.mxu0
  %v178 = vld [vmem:[%s5] sm:$0xf]
  %v179 = vld [vmem:[%s5 + $0x4] sm:$0xf]
  %v180 = vld [vmem:[%s6] sm:$0xf]
  %v181 = vld [vmem:[%s6 + $0x4] sm:$0xf]
  %v182 = vld [vmem:[%s7] sm:$0xf]
  %v183 = vld [vmem:[%s7 + $0x4] sm:$0xf]
  %v184 = vpack.c.bf16 %v118, %v115
  %v187 = vunpack.c.l.b16 %v178
  %v188 = vunpack.c.l.b16 %v179
  %v189 = vpack.c.b16 %v188, %v187
  %vm190 = vcmask 130048
  %v192 = vsel %vm190, %v189, 0
  %194 = vmatprep.subr.bf16.mxu0 0
  %195 = vmatpush1.bf16.msra.mxu0 %v184
  %196 = vmatprep.subr.bf16.mxu0 0
  %197 = vmatpush1.bf16.msra.mxu0 0
  %198 = vmatprep.subr.bf16.mxu0 0
  %199 = vmatpush1.bf16.msra.mxu0 0
  %200 = vmatprep.subr.bf16.mxu0 0
  %201 = vmatpush1.bf16.msra.mxu0 0
  %202 = vmatprep.subr.bf16.mxu0 0
  %203 = vmatpush1.bf16.msra.mxu0 0
  %204 = vmatprep.subr.bf16.mxu0 0
  %205 = vmatpush1.bf16.msra.mxu0 0
  %206 = vmatprep.subr.bf16.mxu0 0
  %207 = vmatpush1.bf16.msra.mxu0 0
  %208 = vmatprep.subr.bf16.mxu0 0
  %209 = vmatpush1.bf16.msra.mxu0 0
  %210 = vmatprep.subr.bf16.mxu0 0
  %211 = vmatpush1.bf16.msra.mxu0 0
  %212 = vmatprep.subr.bf16.mxu0 0
  %213 = vmatpush1.bf16.msra.mxu0 0
  %214 = vmatprep.subr.bf16.mxu0 0
  %215 = vmatpush1.bf16.msra.mxu0 0
  %216 = vmatprep.subr.bf16.mxu0 0
  %217 = vmatpush1.bf16.msra.mxu0 0
  %218 = vmatprep.subr.bf16.mxu0 0
  %219 = vmatpush1.bf16.msra.mxu0 0
  %220 = vmatprep.subr.bf16.mxu0 0
  %221 = vmatpush1.bf16.msra.mxu0 0
  %222 = vmatprep.subr.bf16.mxu0 0
  %223 = vmatpush1.bf16.msra.mxu0 0
  %224 = vmatprep.subr.bf16.mxu0 0
  %225 = vmatpush1.bf16.msra.mxu0 0
  %226 = vmatprep.mubr.bf16.mxu0 0
  %227 = vmatmul.mubr.bf16.gmra.mrb[0].mxu0 %v192
  %v228 = vpop.f32.mrb[0].mxu0
  %v229 = vadd.f32 0.0, %v228
  %v230 = vpop.f32.mrb[0].mxu0
  %v231 = vpop.f32.mrb[0].mxu0
  %v232 = vadd.f32 0.0, %v231
  %v233 = vpop.f32.mrb[0].mxu0
  %234 = vdwg.mxu0
  %v235 = vpack.c.bf16 %v175, %v172
  %v238 = vunpack.c.l.b16 %v180
  %v239 = vunpack.c.l.b16 %v181
  %v240 = vpack.c.b16 %v239, %v238
  %v242 = vsel %vm190, %v240, 0
  %244 = vmatprep.subr.bf16.mxu0 0
  %245 = vmatpush1.bf16.msra.mxu0 %v235
  %246 = vmatprep.subr.bf16.mxu0 0
  %247 = vmatpush1.bf16.msra.mxu0 0
  %248 = vmatprep.subr.bf16.mxu0 0
  %249 = vmatpush1.bf16.msra.mxu0 0
  %250 = vmatprep.subr.bf16.mxu0 0
  %251 = vmatpush1.bf16.msra.mxu0 0
  %252 = vmatprep.subr.bf16.mxu0 0
  %253 = vmatpush1.bf16.msra.mxu0 0
  %254 = vmatprep.subr.bf16.mxu0 0
  %255 = vmatpush1.bf16.msra.mxu0 0
  %256 = vmatprep.subr.bf16.mxu0 0
  %257 = vmatpush1.bf16.msra.mxu0 0
  %258 = vmatprep.subr.bf16.mxu0 0
  %259 = vmatpush1.bf16.msra.mxu0 0
  %260 = vmatprep.subr.bf16.mxu0 0
  %261 = vmatpush1.bf16.msra.mxu0 0
  %262 = vmatprep.subr.bf16.mxu0 0
  %263 = vmatpush1.bf16.msra.mxu0 0
  %264 = vmatprep.subr.bf16.mxu0 0
  %265 = vmatpush1.bf16.msra.mxu0 0
  %266 = vmatprep.subr.bf16.mxu0 0
  %267 = vmatpush1.bf16.msra.mxu0 0
  %268 = vmatprep.subr.bf16.mxu0 0
  %269 = vmatpush1.bf16.msra.mxu0 0
  %270 = vmatprep.subr.bf16.mxu0 0
  %271 = vmatpush1.bf16.msra.mxu0 0
  %272 = vmatprep.subr.bf16.mxu0 0
  %273 = vmatpush1.bf16.msra.mxu0 0
  %274 = vmatprep.subr.bf16.mxu0 0
  %275 = vmatpush1.bf16.msra.mxu0 0
  %276 = vmatprep.mubr.bf16.mxu0 0
  %277 = vmatmul.mubr.bf16.gmra.mrb[0].mxu0 %v242
  %v278 = vpop.f32.mrb[0].mxu0
  %v279 = vadd.f32 0.0, %v278
  %v280 = vpop.f32.mrb[0].mxu0
  %v281 = vpop.f32.mrb[0].mxu0
  %v282 = vadd.f32 0.0, %v281
  %v283 = vpop.f32.mrb[0].mxu0
  %284 = vdwg.mxu0
  %v285 = vadd.f32 %v115, %v172
  %v286 = vadd.f32 %v118, %v175
  %v287 = vpack.c.bf16 %v286, %v285
  %v290 = vunpack.c.l.b16 %v182
  %v291 = vunpack.c.l.b16 %v183
  %v292 = vpack.c.b16 %v291, %v290
  %v294 = vsel %vm190, %v292, 0
  %296 = vmatprep.subr.bf16.mxu0 0
  %297 = vmatpush1.bf16.msra.mxu0 %v287
  %298 = vmatprep.subr.bf16.mxu0 0
  %299 = vmatpush1.bf16.msra.mxu0 0
  %300 = vmatprep.subr.bf16.mxu0 0
  %301 = vmatpush1.bf16.msra.mxu0 0
  %302 = vmatprep.subr.bf16.mxu0 0
  %303 = vmatpush1.bf16.msra.mxu0 0
  %304 = vmatprep.subr.bf16.mxu0 0
  %305 = vmatpush1.bf16.msra.mxu0 0
  %306 = vmatprep.subr.bf16.mxu0 0
  %307 = vmatpush1.bf16.msra.mxu0 0
  %308 = vmatprep.subr.bf16.mxu0 0
  %309 = vmatpush1.bf16.msra.mxu0 0
  %310 = vmatprep.subr.bf16.mxu0 0
  %311 = vmatpush1.bf16.msra.mxu0 0
  %312 = vmatprep.subr.bf16.mxu0 0
  %313 = vmatpush1.bf16.msra.mxu0 0
  %314 = vmatprep.subr.bf16.mxu0 0
  %315 = vmatpush1.bf16.msra.mxu0 0
  %316 = vmatprep.subr.bf16.mxu0 0
  %317 = vmatpush1.bf16.msra.mxu0 0
  %318 = vmatprep.subr.bf16.mxu0 0
  %319 = vmatpush1.bf16.msra.mxu0 0
  %320 = vmatprep.subr.bf16.mxu0 0
  %321 = vmatpush1.bf16.msra.mxu0 0
  %322 = vmatprep.subr.bf16.mxu0 0
  %323 = vmatpush1.bf16.msra.mxu0 0
  %324 = vmatprep.subr.bf16.mxu0 0
  %325 = vmatpush1.bf16.msra.mxu0 0
  %326 = vmatprep.subr.bf16.mxu0 0
  %327 = vmatpush1.bf16.msra.mxu0 0
  %328 = vmatprep.mubr.bf16.mxu0 0
  %329 = vmatmul.mubr.bf16.gmra.mrb[0].mxu0 %v294
  %v330 = vpop.f32.mrb[0].mxu0
  %v331 = vadd.f32 0.0, %v330
  %v332 = vpop.f32.mrb[0].mxu0
  %v333 = vpop.f32.mrb[0].mxu0
  %v334 = vadd.f32 0.0, %v333
  %v335 = vpop.f32.mrb[0].mxu0
  %336 = vdwg.mxu0
  %v337 = vsub.f32 %v229, %v279
  %v338 = vsub.f32 %v232, %v282
  %v339 = vsub.f32 %v331, %v229
  %v340 = vsub.f32 %v334, %v232
  %v341 = vsub.f32 %v339, %v279
  %v342 = vsub.f32 %v340, %v282
  %v343 = vld [vmem:[%s8] sm:$0xf]
  %v344 = vld [vmem:[%s8 + $0x4] sm:$0xf]
  %v345 = vld [vmem:[%s9] sm:$0xf]
  %v346 = vld [vmem:[%s9 + $0x4] sm:$0xf]
  %v347 = vld [vmem:[%s10] sm:$0xf]
  %v348 = vld [vmem:[%s10 + $0x4] sm:$0xf]
  %v349 = vpack.c.bf16 %v338, %v337
  %v352 = vunpack.c.l.b16 %v343
  %v353 = vunpack.c.l.b16 %v344
  %v354 = vpack.c.b16 %v353, %v352
  %v356 = vsel %vm190, %v354, 0
  %358 = vmatprep.subr.bf16.mxu0 0
  %359 = vmatpush1.bf16.msra.mxu0 %v349
  %360 = vmatprep.subr.bf16.mxu0 0
  %361 = vmatpush1.bf16.msra.mxu0 0
  %362 = vmatprep.subr.bf16.mxu0 0
  %363 = vmatpush1.bf16.msra.mxu0 0
  %364 = vmatprep.subr.bf16.mxu0 0
  %365 = vmatpush1.bf16.msra.mxu0 0
  %366 = vmatprep.subr.bf16.mxu0 0
  %367 = vmatpush1.bf16.msra.mxu0 0
  %368 = vmatprep.subr.bf16.mxu0 0
  %369 = vmatpush1.bf16.msra.mxu0 0
  %370 = vmatprep.subr.bf16.mxu0 0
  %371 = vmatpush1.bf16.msra.mxu0 0
  %372 = vmatprep.subr.bf16.mxu0 0
  %373 = vmatpush1.bf16.msra.mxu0 0
  %374 = vmatprep.subr.bf16.mxu0 0
  %375 = vmatpush1.bf16.msra.mxu0 0
  %376 = vmatprep.subr.bf16.mxu0 0
  %377 = vmatpush1.bf16.msra.mxu0 0
  %378 = vmatprep.subr.bf16.mxu0 0
  %379 = vmatpush1.bf16.msra.mxu0 0
  %380 = vmatprep.subr.bf16.mxu0 0
  %381 = vmatpush1.bf16.msra.mxu0 0
  %382 = vmatprep.subr.bf16.mxu0 0
  %383 = vmatpush1.bf16.msra.mxu0 0
  %384 = vmatprep.subr.bf16.mxu0 0
  %385 = vmatpush1.bf16.msra.mxu0 0
  %386 = vmatprep.subr.bf16.mxu0 0
  %387 = vmatpush1.bf16.msra.mxu0 0
  %388 = vmatprep.subr.bf16.mxu0 0
  %389 = vmatpush1.bf16.msra.mxu0 0
  %390 = vmatprep.mubr.bf16.mxu0 0
  %391 = vmatmul.mubr.bf16.gmra.mrb[0].mxu0 %v356
  %v392 = vpop.f32.mrb[0].mxu0
  %v393 = vadd.f32 0.0, %v392
  %v394 = vpop.f32.mrb[0].mxu0
  %v395 = vpop.f32.mrb[0].mxu0
  %v396 = vadd.f32 0.0, %v395
  %v397 = vpop.f32.mrb[0].mxu0
  %398 = vdwg.mxu0
  %v399 = vpack.c.bf16 %v342, %v341
  %v402 = vunpack.c.l.b16 %v345
  %v403 = vunpack.c.l.b16 %v346
  %v404 = vpack.c.b16 %v403, %v402
  %v406 = vsel %vm190, %v404, 0
  %408 = vmatprep.subr.bf16.mxu0 0
  %409 = vmatpush1.bf16.msra.mxu0 %v399
  %410 = vmatprep.subr.bf16.mxu0 0
  %411 = vmatpush1.bf16.msra.mxu0 0
  %412 = vmatprep.subr.bf16.mxu0 0
  %413 = vmatpush1.bf16.msra.mxu0 0
  %414 = vmatprep.subr.bf16.mxu0 0
  %415 = vmatpush1.bf16.msra.mxu0 0
  %416 = vmatprep.subr.bf16.mxu0 0
  %417 = vmatpush1.bf16.msra.mxu0 0
  %418 = vmatprep.subr.bf16.mxu0 0
  %419 = vmatpush1.bf16.msra.mxu0 0
  %420 = vmatprep.subr.bf16.mxu0 0
  %421 = vmatpush1.bf16.msra.mxu0 0
  %422 = vmatprep.subr.bf16.mxu0 0
  %423 = vmatpush1.bf16.msra.mxu0 0
  %424 = vmatprep.subr.bf16.mxu0 0
  %425 = vmatpush1.bf16.msra.mxu0 0
  %426 = vmatprep.subr.bf16.mxu0 0
  %427 = vmatpush1.bf16.msra.mxu0 0
  %428 = vmatprep.subr.bf16.mxu0 0
  %429 = vmatpush1.bf16.msra.mxu0 0
  %430 = vmatprep.subr.bf16.mxu0 0
  %431 = vmatpush1.bf16.msra.mxu0 0
  %432 = vmatprep.subr.bf16.mxu0 0
  %433 = vmatpush1.bf16.msra.mxu0 0
  %434 = vmatprep.subr.bf16.mxu0 0
  %435 = vmatpush1.bf16.msra.mxu0 0
  %436 = vmatprep.subr.bf16.mxu0 0
  %437 = vmatpush1.bf16.msra.mxu0 0
  %438 = vmatprep.subr.bf16.mxu0 0
  %439 = vmatpush1.bf16.msra.mxu0 0
  %440 = vmatprep.mubr.bf16.mxu0 0
  %441 = vmatmul.mubr.bf16.gmra.mrb[0].mxu0 %v406
  %v442 = vpop.f32.mrb[0].mxu0
  %v443 = vadd.f32 0.0, %v442
  %v444 = vpop.f32.mrb[0].mxu0
  %v445 = vpop.f32.mrb[0].mxu0
  %v446 = vadd.f32 0.0, %v445
  %v447 = vpop.f32.mrb[0].mxu0
  %448 = vdwg.mxu0
  %v449 = vadd.f32 %v337, %v341
  %v450 = vadd.f32 %v338, %v342
  %v451 = vpack.c.bf16 %v450, %v449
  %v454 = vunpack.c.l.b16 %v347
  %v455 = vunpack.c.l.b16 %v348
  %v456 = vpack.c.b16 %v455, %v454
  %v458 = vsel %vm190, %v456, 0
  %460 = vmatprep.subr.bf16.mxu0 0
  %461 = vmatpush1.bf16.msra.mxu0 %v451
  %462 = vmatprep.subr.bf16.mxu0 0
  %463 = vmatpush1.bf16.msra.mxu0 0
  %464 = vmatprep.subr.bf16.mxu0 0
  %465 = vmatpush1.bf16.msra.mxu0 0
  %466 = vmatprep.subr.bf16.mxu0 0
  %467 = vmatpush1.bf16.msra.mxu0 0
  %468 = vmatprep.subr.bf16.mxu0 0
  %469 = vmatpush1.bf16.msra.mxu0 0
  %470 = vmatprep.subr.bf16.mxu0 0
  %471 = vmatpush1.bf16.msra.mxu0 0
  %472 = vmatprep.subr.bf16.mxu0 0
  %473 = vmatpush1.bf16.msra.mxu0 0
  %474 = vmatprep.subr.bf16.mxu0 0
  %475 = vmatpush1.bf16.msra.mxu0 0
  %476 = vmatprep.subr.bf16.mxu0 0
  %477 = vmatpush1.bf16.msra.mxu0 0
  %478 = vmatprep.subr.bf16.mxu0 0
  %479 = vmatpush1.bf16.msra.mxu0 0
  %480 = vmatprep.subr.bf16.mxu0 0
  %481 = vmatpush1.bf16.msra.mxu0 0
  %482 = vmatprep.subr.bf16.mxu0 0
  %483 = vmatpush1.bf16.msra.mxu0 0
  %484 = vmatprep.subr.bf16.mxu0 0
  %485 = vmatpush1.bf16.msra.mxu0 0
  %486 = vmatprep.subr.bf16.mxu0 0
  %487 = vmatpush1.bf16.msra.mxu0 0
  %488 = vmatprep.subr.bf16.mxu0 0
  %489 = vmatpush1.bf16.msra.mxu0 0
  %490 = vmatprep.subr.bf16.mxu0 0
  %491 = vmatpush1.bf16.msra.mxu0 0
  %492 = vmatprep.mubr.bf16.mxu0 0
  %493 = vmatmul.mubr.bf16.gmra.mrb[0].mxu0 %v458
  %v494 = vpop.f32.mrb[0].mxu0
  %v495 = vadd.f32 0.0, %v494
  %v496 = vpop.f32.mrb[0].mxu0
  %v497 = vpop.f32.mrb[0].mxu0
  %v498 = vadd.f32 0.0, %v497
  %v499 = vpop.f32.mrb[0].mxu0
  %500 = vdwg.mxu0
  %v501 = vsub.f32 %v393, %v443
  %v502 = vsub.f32 %v396, %v446
  %v503 = vsub.f32 %v495, %v393
  %v504 = vsub.f32 %v498, %v396
  %v505 = vsub.f32 %v503, %v443
  %v506 = vsub.f32 %v504, %v446
  %v507 = vld [vmem:[%s11] sm:$0xf]
  %v508 = vld [vmem:[%s11 + $0x4] sm:$0xf]
  %v509 = vld [vmem:[%s11 + $0x8] sm:$0xf]
  %v510 = vld [vmem:[%s11 + $0xc] sm:$0xf]
  %v511 = vld [vmem:[%s12] sm:$0xf]
  %v512 = vld [vmem:[%s12 + $0x4] sm:$0xf]
  %v513 = vld [vmem:[%s12 + $0x8] sm:$0xf]
  %v514 = vld [vmem:[%s12 + $0xc] sm:$0xf]
  %v515 = vld [vmem:[%s13] sm:$0xf]
  %v516 = vld [vmem:[%s13 + $0x4] sm:$0xf]
  %v517 = vld [vmem:[%s13 + $0x8] sm:$0xf]
  %v518 = vld [vmem:[%s13 + $0xc] sm:$0xf]
  %v519 = vpack.c.bf16 %v502, %v501
  %v524 = vunpack.c.l.b16 %v507
  %v525 = vunpack.c.l.b16 %v508
  %v526 = vunpack.c.l.b16 %v509
  %v527 = vunpack.c.l.b16 %v510
  %v528 = vpack.c.b16 %v525, %v524
  %v529 = vpack.c.b16 %v527, %v526
  %v533 = vsel %vm76, %v519, 0
  %535 = vmatprep.subr.bf16.mxu0 0
  %536 = vmatpush1.bf16.msra.mxu0 %v528
  %537 = vmatprep.subr.bf16.mxu0 0
  %538 = vmatpush1.bf16.msra.mxu0 %v529
  %539 = vmatprep.subr.bf16.mxu0 0
  %540 = vmatpush1.bf16.msra.mxu0 0
  %541 = vmatprep.subr.bf16.mxu0 0
  %542 = vmatpush1.bf16.msra.mxu0 0
  %543 = vmatprep.subr.bf16.mxu0 0
  %544 = vmatpush1.bf16.msra.mxu0 0
  %545 = vmatprep.subr.bf16.mxu0 0
  %546 = vmatpush1.bf16.msra.mxu0 0
  %547 = vmatprep.subr.bf16.mxu0 0
  %548 = vmatpush1.bf16.msra.mxu0 0
  %549 = vmatprep.subr.bf16.mxu0 0
  %550 = vmatpush1.bf16.msra.mxu0 0
  %551 = vmatprep.subr.bf16.mxu0 0
  %552 = vmatpush1.bf16.msra.mxu0 0
  %553 = vmatprep.subr.bf16.mxu0 0
  %554 = vmatpush1.bf16.msra.mxu0 0
  %555 = vmatprep.subr.bf16.mxu0 0
  %556 = vmatpush1.bf16.msra.mxu0 0
  %557 = vmatprep.subr.bf16.mxu0 0
  %558 = vmatpush1.bf16.msra.mxu0 0
  %559 = vmatprep.subr.bf16.mxu0 0
  %560 = vmatpush1.bf16.msra.mxu0 0
  %561 = vmatprep.subr.bf16.mxu0 0
  %562 = vmatpush1.bf16.msra.mxu0 0
  %563 = vmatprep.subr.bf16.mxu0 0
  %564 = vmatpush1.bf16.msra.mxu0 0
  %565 = vmatprep.subr.bf16.mxu0 0
  %566 = vmatpush1.bf16.msra.mxu0 0
  %567 = vmatprep.mubr.bf16.mxu0 0
  %568 = vmatmul.mubr.bf16.gmra.mrb[0].mxu0 %v533
  %v569 = vpop.f32.mrb[0].mxu0
  %v570 = vadd.f32 0.0, %v569
  %v571 = vpop.f32.mrb[0].mxu0
  %v572 = vpop.f32.mrb[0].mxu0
  %v573 = vadd.f32 0.0, %v572
  %v574 = vpop.f32.mrb[0].mxu0
  %575 = vdwg.mxu0
  %v576 = vpack.c.bf16 %v506, %v505
  %v581 = vunpack.c.l.b16 %v511
  %v582 = vunpack.c.l.b16 %v512
  %v583 = vunpack.c.l.b16 %v513
  %v584 = vunpack.c.l.b16 %v514
  %v585 = vpack.c.b16 %v582, %v581
  %v586 = vpack.c.b16 %v584, %v583
  %v590 = vsel %vm76, %v576, 0
  %592 = vmatprep.subr.bf16.mxu0 0
  %593 = vmatpush1.bf16.msra.mxu0 %v585
  %594 = vmatprep.subr.bf16.mxu0 0
  %595 = vmatpush1.bf16.msra.mxu0 %v586
  %596 = vmatprep.subr.bf16.mxu0 0
  %597 = vmatpush1.bf16.msra.mxu0 0
  %598 = vmatprep.subr.bf16.mxu0 0
  %599 = vmatpush1.bf16.msra.mxu0 0
  %600 = vmatprep.subr.bf16.mxu0 0
  %601 = vmatpush1.bf16.msra.mxu0 0
  %602 = vmatprep.subr.bf16.mxu0 0
  %603 = vmatpush1.bf16.msra.mxu0 0
  %604 = vmatprep.subr.bf16.mxu0 0
  %605 = vmatpush1.bf16.msra.mxu0 0
  %606 = vmatprep.subr.bf16.mxu0 0
  %607 = vmatpush1.bf16.msra.mxu0 0
  %608 = vmatprep.subr.bf16.mxu0 0
  %609 = vmatpush1.bf16.msra.mxu0 0
  %610 = vmatprep.subr.bf16.mxu0 0
  %611 = vmatpush1.bf16.msra.mxu0 0
  %612 = vmatprep.subr.bf16.mxu0 0
  %613 = vmatpush1.bf16.msra.mxu0 0
  %614 = vmatprep.subr.bf16.mxu0 0
  %615 = vmatpush1.bf16.msra.mxu0 0
  %616 = vmatprep.subr.bf16.mxu0 0
  %617 = vmatpush1.bf16.msra.mxu0 0
  %618 = vmatprep.subr.bf16.mxu0 0
  %619 = vmatpush1.bf16.msra.mxu0 0
  %620 = vmatprep.subr.bf16.mxu0 0
  %621 = vmatpush1.bf16.msra.mxu0 0
  %622 = vmatprep.subr.bf16.mxu0 0
  %623 = vmatpush1.bf16.msra.mxu0 0
  %624 = vmatprep.mubr.bf16.mxu0 0
  %625 = vmatmul.mubr.bf16.gmra.mrb[0].mxu0 %v590
  %v626 = vpop.f32.mrb[0].mxu0
  %v627 = vadd.f32 0.0, %v626
  %v628 = vpop.f32.mrb[0].mxu0
  %v629 = vpop.f32.mrb[0].mxu0
  %v630 = vadd.f32 0.0, %v629
  %v631 = vpop.f32.mrb[0].mxu0
  %632 = vdwg.mxu0
  %v633 = vadd.f32 %v501, %v505
  %v634 = vadd.f32 %v502, %v506
  %v635 = vpack.c.bf16 %v634, %v633
  %v640 = vunpack.c.l.b16 %v515
  %v641 = vunpack.c.l.b16 %v516
  %v642 = vunpack.c.l.b16 %v517
  %v643 = vunpack.c.l.b16 %v518
  %v644 = vpack.c.b16 %v641, %v640
  %v645 = vpack.c.b16 %v643, %v642
  %v649 = vsel %vm76, %v635, 0
  %651 = vmatprep.subr.bf16.mxu0 0
  %652 = vmatpush1.bf16.msra.mxu0 %v644
  %653 = vmatprep.subr.bf16.mxu0 0
  %654 = vmatpush1.bf16.msra.mxu0 %v645
  %655 = vmatprep.subr.bf16.mxu0 0
  %656 = vmatpush1.bf16.msra.mxu0 0
  %657 = vmatprep.subr.bf16.mxu0 0
  %658 = vmatpush1.bf16.msra.mxu0 0
  %659 = vmatprep.subr.bf16.mxu0 0
  %660 = vmatpush1.bf16.msra.mxu0 0
  %661 = vmatprep.subr.bf16.mxu0 0
  %662 = vmatpush1.bf16.msra.mxu0 0
  %663 = vmatprep.subr.bf16.mxu0 0
  %664 = vmatpush1.bf16.msra.mxu0 0
  %665 = vmatprep.subr.bf16.mxu0 0
  %666 = vmatpush1.bf16.msra.mxu0 0
  %667 = vmatprep.subr.bf16.mxu0 0
  %668 = vmatpush1.bf16.msra.mxu0 0
  %669 = vmatprep.subr.bf16.mxu0 0
  %670 = vmatpush1.bf16.msra.mxu0 0
  %671 = vmatprep.subr.bf16.mxu0 0
  %672 = vmatpush1.bf16.msra.mxu0 0
  %673 = vmatprep.subr.bf16.mxu0 0
  %674 = vmatpush1.bf16.msra.mxu0 0
  %675 = vmatprep.subr.bf16.mxu0 0
  %676 = vmatpush1.bf16.msra.mxu0 0
  %677 = vmatprep.subr.bf16.mxu0 0
  %678 = vmatpush1.bf16.msra.mxu0 0
  %679 = vmatprep.subr.bf16.mxu0 0
  %680 = vmatpush1.bf16.msra.mxu0 0
  %681 = vmatprep.subr.bf16.mxu0 0
  %682 = vmatpush1.bf16.msra.mxu0 0
  %683 = vmatprep.mubr.bf16.mxu0 0
  %684 = vmatmul.mubr.bf16.gmra.mrb[0].mxu0 %v649
  %v685 = vpop.f32.mrb[0].mxu0
  %v686 = vadd.f32 0.0, %v685
  %v687 = vpop.f32.mrb[0].mxu0
  %v688 = vpop.f32.mrb[0].mxu0
  %v689 = vadd.f32 0.0, %v688
  %v690 = vpop.f32.mrb[0].mxu0
  %691 = vdwg.mxu0
  %v692 = vsub.f32 %v570, %v627
  %v693 = vsub.f32 %v573, %v630
  %v694 = vsub.f32 %v686, %v570
  %v695 = vsub.f32 %v689, %v573
  %v696 = vsub.f32 %v694, %v627
  %v697 = vsub.f32 %v695, %v630
  %v698 = vmul.f32 %v692, %v692
  %v699 = vmul.f32 %v693, %v693
  %v700 = vmul.f32 %v696, %v696
  %v701 = vmul.f32 %v697, %v697
  %v702 = vadd.f32 %v698, %v700
  %v703 = vadd.f32 %v699, %v701
  %s704 = sld [smem:[#allocation2]]
  %v705 = vstv %s704
  %v706 = vmul.f32 %v705, %v702
  %v707 = vmul.f32 %v705, %v703
  %s708 = sld [smem:[#allocation3]]
  %v709 = vstv %s708
  %v710 = vadd.f32 %v706, %v709
  %v711 = vadd.f32 %v707, %v709
  %712 = vst.msk [vmem:[%s15] sm:$0xff] %vm76, %v710
  %713 = vst.msk [vmem:[%s15 + $0x8] sm:$0xff] %vm76, %v711
  // Predicated region
  $region62: #{socs_fused_litho_forward.1} parent=0 // pred_check
    _
  $region63: #{socs_fused_litho_forward.1} parent=0 // pred_check_branch
    %715 = sbr.rel (0) target = $region65
  $region64: #{socs_fused_litho_forward.1} parent=0 // pred_region
    _
  $region65: #{socs_fused_litho_forward.1} parent=0 // pred_fallthru
    _
  // Predicated region
  $region66: #{socs_fused_litho_forward.1} parent=0 // pred_check
    _
  $region67: #{socs_fused_litho_forward.1} parent=0 // pred_check_branch
    %717 = sbr.rel (0) target = $region69
  $region68: #{socs_fused_litho_forward.1} parent=0 // pred_region
    _
  $region69: #{socs_fused_litho_forward.1} parent=0 // pred_fallthru
    _

</llo_original>
